<compile_context>
chip_gen: v6e
topology: v6e:2x2x1
jax: 0.10.0
libtpu: 0.0.40
codegen_flags: <defaults>
</compile_context>

<pallas_src>
import functools

import jax
import jax.numpy as jnp
from jax.experimental import pallas as pl
from jax.experimental.pallas import tpu as pltpu

HIDDEN = 256
LANE = 128
MAX_TILE_B = 2048   # upper bound on batch-tile rows (VMEM-safe on v7x's 64 MiB/TC)
MIN_SPLIT_B = 512   # once B >= 2*this, force >= 2 grid steps (both v7x TCs busy)


def actor_kernel(state_ref, w1_ref, w2_ref, wh_ref, b12_ref, consts_ref, out_ref):
    # ---- MLP trunk: bf16 operands, f32 accumulation ----
    x = state_ref[...].astype(jnp.bfloat16)                       # (TB, ds_pad)

    b12 = b12_ref[...]                                             # (2, 256) f32
    h1 = jnp.dot(x, w1_ref[...], preferred_element_type=jnp.float32) + b12[0:1]
    h1 = jnp.maximum(h1, 0.0)                                      # (TB, 256) f32

    h2 = jnp.dot(h1.astype(jnp.bfloat16), w2_ref[...],
                 preferred_element_type=jnp.float32) + b12[1:2]
    h2 = jnp.maximum(h2, 0.0)                                      # (TB, 256) f32

    # ---- fused head: [mean | cholesky] in one lane-dense matmul (kept f32) ----
    c = consts_ref[...]                                            # (8, head_pad) f32
    b_head, low, rng = c[0:1], c[1:2], c[2:3]
    mean_mask = c[3:4] > 0.5
    diag_mask = c[4:5] > 0.5

    y = jnp.dot(h2, wh_ref[...], preferred_element_type=jnp.float32) + b_head

    # shared transcendental for both epilogues
    z = jnp.exp(-jnp.abs(y))                       # exp of non-positive -> no inf
    inv = pl.reciprocal(1.0 + z, approx=True)

    # numerically stable sigmoid, rescaled to [low, high]
    sig = jnp.where(y >= 0.0, 1.0, z) * inv
    mean_val = low + rng * sig

    # numerically stable softplus, applied only on diagonal lanes
    sp = jnp.maximum(y, 0.0) + jnp.log1p(z)
    chol_val = jnp.where(diag_mask, sp, y)

    # one lane-dense store: lanes [0, da) = mean, [da, da+nchol) = chol vector,
    # lanes >= da+nchol are exact zeros (zero-padded w_head/b_head).
    out_ref[...] = jnp.where(mean_mask, mean_val, chol_val)


def prepare_actor(params_f32, action_low, action_high, da, ds):
    """Pack the PyTorch-layout params into the fused/padded kernel layout."""
    w1, b1, w2, b2, wm, bm, wc, bc = params_f32
    nchol = da * (da + 1) // 2
    head = da + nchol
    head_pad = LANE * pl.cdiv(head, LANE)
    ds_pad = 8 * pl.cdiv(ds, 8)

    # pad the state feature dim (K of the first matmul) with zero rows
    w1p = jnp.pad(w1, ((0, ds_pad - ds), (0, 0)))

    w_head = jnp.pad(jnp.concatenate([wm, wc], axis=1), ((0, 0), (0, head_pad - head)))
    b_head = jnp.pad(jnp.concatenate([bm, bc], axis=1), ((0, 0), (0, head_pad - head)))

    low = jnp.pad(action_low.astype(jnp.float32), ((0, 0), (0, head_pad - da)))
    high = jnp.pad(action_high.astype(jnp.float32), ((0, 0), (0, head_pad - da)))
    rng = high - low

    lane = jnp.arange(head_pad)[None, :]
    mean_mask = (lane < da).astype(jnp.float32)
    k = jnp.arange(1, da + 1)
    diag_idx = da + (k * (k + 1) // 2 - 1)        # diag slots of packed tril vec, offset by da
    diag_mask = jnp.zeros((1, head_pad), jnp.float32).at[0, diag_idx].set(1.0)

    # single resident constants slab: [b_head | low | range | mean_mask | diag_mask | 0..]
    consts = jnp.concatenate(
        [b_head, low, rng, mean_mask, diag_mask,
         jnp.zeros((3, head_pad), jnp.float32)], axis=0).astype(jnp.float32)

    b12 = jnp.concatenate([b1, b2], axis=0).astype(jnp.float32)    # (2, 256)

    kernel_params = (
        w1p.astype(jnp.bfloat16),        # (ds_pad, 256)
        w2.astype(jnp.bfloat16),         # (256, 256)
        w_head.astype(jnp.float32),      # (256, head_pad)  -- head kept f32
        b12,                             # (2, 256)
        consts,                          # (8, head_pad)
    )
    return kernel_params, head_pad, ds_pad


@functools.partial(jax.jit, static_argnames=("da", "head_pad", "ds_pad"))
def actor_forward(state, kernel_params, da, head_pad, ds_pad):
    """state: (B, ds) f32 -> (mean (B, da), cholesky (B, da, da))."""
    B, ds = state.shape
    nchol = da * (da + 1) // 2
    head = da + nchol

    # ---- batch tiling: big tiles (amortize ~0.35us/step), even step count when
    # split (both v7x TCs), non-degenerate last tile ----
    n_steps = pl.cdiv(B, MAX_TILE_B)
    if B >= 2 * MIN_SPLIT_B:
        n_steps = max(n_steps, 2)
    if n_steps > 1 and n_steps % 2 == 1:
        n_steps += 1
    tile_b = 8 * pl.cdiv(pl.cdiv(B, n_steps), 8)
    b_pad = tile_b * n_steps

    # NOTE: padded batch rows carry relu(bias)-driven garbage through the net;
    # they are sliced off below and must never enter an in-kernel reduction.
    state_p = jnp.pad(state, ((0, b_pad - B), (0, ds_pad - ds)))

    w1p, w2, wh, b12, consts = kernel_params

    def resident(arr):
        return pl.BlockSpec(arr.shape, lambda i: (0, 0))

    out = pl.pallas_call(
        actor_kernel,
        out_shape=jax.ShapeDtypeStruct((b_pad, head_pad), jnp.float32),
        grid=(b_pad // tile_b,),
        in_specs=[
            pl.BlockSpec((tile_b, ds_pad), lambda i: (i, 0)),      # state tile
            resident(w1p), resident(w2), resident(wh),
            resident(b12), resident(consts),
        ],
        out_specs=pl.BlockSpec((tile_b, head_pad), lambda i: (i, 0)),
        compiler_params=pltpu.CompilerParams(
            dimension_semantics=("parallel",),
            vmem_limit_bytes=48 * 1024 * 1024,
        ),
    )(state_p, w1p, w2, wh, b12, consts)

    mean = out[:B, :da]

    # Glue: assemble (B, da, da) lower-triangular matrix with a static GATHER
    # (fuses with the slice; padded lanes of `out` are exact zeros).
    if head < head_pad:
        src = out[:B]
        zero_lane = head                    # a guaranteed-zero lane
    else:
        src = jnp.pad(out[:B], ((0, 0), (0, 1)))
        zero_lane = head_pad
    rows = jnp.arange(da)[:, None]
    cols = jnp.arange(da)[None, :]
    packed = rows * (rows + 1) // 2 + cols          # position of (r,c) in tril vec
    gather = jnp.where(cols <= rows, da + packed, zero_lane).reshape(-1)
    cholesky = jnp.take(src, gather, axis=1).reshape(B, da, da)
    return mean, cholesky


def init_params(key, ds, da):
    nchol = da * (da + 1) // 2
    keys = jax.random.split(key, 8)

    def linear(kw, kb, fan_in, fan_out):
        # PyTorch nn.Linear default init: U(-1/sqrt(fan_in), 1/sqrt(fan_in))
        bound = 1.0 / jnp.sqrt(fan_in)
        w = jax.random.uniform(kw, (fan_in, fan_out), jnp.float32, -bound, bound)
        b = jax.random.uniform(kb, (1, fan_out), jnp.float32, -bound, bound)
        return w, b

    w1, b1 = linear(keys[0], keys[1], ds, HIDDEN)
    w2, b2 = linear(keys[2], keys[3], HIDDEN, HIDDEN)
    wm, bm = linear(keys[4], keys[5], HIDDEN, da)
    wc, bc = linear(keys[6], keys[7], HIDDEN, nchol)
    return (w1, b1, w2, b2, wm, bm, wc, bc)


def actor_reference(state, params_f32, action_low, action_high, da):
    """Pure-JAX reference matching the PyTorch forward."""
    w1, b1, w2, b2, wm, bm, wc, bc = params_f32
    x = jnp.maximum(state @ w1 + b1, 0.0)
    x = jnp.maximum(x @ w2 + b2, 0.0)
    mean = action_low + (action_high - action_low) * jax.nn.sigmoid(x @ wm + bm)
    cv = x @ wc + bc
    k = jnp.arange(1, da + 1)
    diag_idx = k * (k + 1) // 2 - 1
    cv = cv.at[:, diag_idx].set(jax.nn.softplus(cv[:, diag_idx]))
    tril_r, tril_c = jnp.tril_indices(da)
    B = state.shape[0]
    chol = jnp.zeros((B, da, da), jnp.float32).at[:, tril_r, tril_c].set(cv)
    return mean, chol


if __name__ == "__main__":
    B, ds, da = 2, 4, 3

    key = jax.random.PRNGKey(0)
    k_params, k_state = jax.random.split(key)

    params = init_params(k_params, ds, da)
    state = jax.random.normal(k_state, (B, ds), jnp.float32)

    # Synthetic env action bounds (e.g. Box(-1, 1, (da,)))
    action_low = jnp.full((1, da), -1.0, jnp.float32)
    action_high = jnp.full((1, da), 1.0, jnp.float32)

    kernel_params, head_pad, ds_pad = prepare_actor(params, action_low, action_high, da, ds)

    mean, cholesky = actor_forward(state, kernel_params, da=da,
                                   head_pad=head_pad, ds_pad=ds_pad)
    jax.block_until_ready((mean, cholesky))

    assert mean.shape == (B, da)
    assert cholesky.shape == (B, da, da)

    # Check vs pure-JAX reference (trunk matmuls use bf16 operands -> small drift;
    # the head matmul is kept in f32).
    mean_ref, chol_ref = actor_reference(state, params, action_low, action_high, da)
    assert jnp.allclose(mean, mean_ref, atol=0.05), (mean, mean_ref)
    assert jnp.allclose(cholesky, chol_ref, atol=0.05), (cholesky, chol_ref)
    # upper triangle must be exactly zero
    assert jnp.all(cholesky * (1.0 - jnp.tril(jnp.ones((da, da)))) == 0.0)

    # TODO(synk): the `action()` method's MultivariateNormal sampling is not part
    # of the forward pass and is left to plain JAX (jax.random.multivariate_normal).
    print("KERNEL_OK")
</pallas_src>

<mosaic_0001>
module attributes {stable_mosaic.version = 11 : i64} {
  func.func @actor_kernel(%arg0: i32, %arg1: memref<8x8xf32, #tpu.memory_space<vmem>>, %arg2: memref<8x256xbf16, #tpu.memory_space<vmem>>, %arg3: memref<256x256xbf16, #tpu.memory_space<vmem>>, %arg4: memref<256x128xf32, #tpu.memory_space<vmem>>, %arg5: memref<2x256xf32, #tpu.memory_space<vmem>>, %arg6: memref<8x128xf32, #tpu.memory_space<vmem>>, %arg7: memref<8x128xf32, #tpu.memory_space<vmem>>) attributes {dimension_semantics = [#tpu.dimension_semantics<parallel>], iteration_bounds = array<i64: 1>, scalar_prefetch = 0 : i64, scratch_operands = 0 : i64, tpu.core_type = #tpu.core_type<tc>, window_params = [{transform_indices = @transform_0, window_bounds = array<i64: 8, 8>}, {pipeline_mode = #tpu.pipeline_mode<synchronous>, transform_indices = @transform_1, window_bounds = array<i64: 8, 256>}, {pipeline_mode = #tpu.pipeline_mode<synchronous>, transform_indices = @transform_2, window_bounds = array<i64: 256, 256>}, {pipeline_mode = #tpu.pipeline_mode<synchronous>, transform_indices = @transform_3, window_bounds = array<i64: 256, 128>}, {pipeline_mode = #tpu.pipeline_mode<synchronous>, transform_indices = @transform_4, window_bounds = array<i64: 2, 256>}, {pipeline_mode = #tpu.pipeline_mode<synchronous>, transform_indices = @transform_5, window_bounds = array<i64: 8, 128>}, {transform_indices = @transform_6, window_bounds = array<i64: 8, 128>}]} {
    %c0 = arith.constant 0 : index
    %c0_0 = arith.constant 0 : index
    %0 = vector.load %arg1[%c0, %c0_0] : memref<8x8xf32, #tpu.memory_space<vmem>>, vector<8x8xf32>
    %1 = arith.truncf %0 : vector<8x8xf32> to vector<8x8xbf16>
    %c0_1 = arith.constant 0 : index
    %c0_2 = arith.constant 0 : index
    %2 = vector.load %arg5[%c0_1, %c0_2] : memref<2x256xf32, #tpu.memory_space<vmem>>, vector<2x256xf32>
    %c0_3 = arith.constant 0 : index
    %c0_4 = arith.constant 0 : index
    %3 = vector.load %arg2[%c0_3, %c0_4] : memref<8x256xbf16, #tpu.memory_space<vmem>>, vector<8x256xbf16>
    %cst = arith.constant dense<0.000000e+00> : vector<8x256xf32>
    %4 = tpu.matmul %1, %3, %cst {dimension_numbers = #tpu.dot_dimension_numbers<[1], [0], [0], [1], [0, 0, 1, 1], [], []>} : vector<8x8xbf16>, vector<8x256xbf16>, vector<8x256xf32> -> vector<8x256xf32>
    %5 = vector.extract_strided_slice %2 {offsets = [0, 0], sizes = [1, 256], strides = [1, 1]} : vector<2x256xf32> to vector<1x256xf32>
    %6 = vector.broadcast %5 : vector<1x256xf32> to vector<8x256xf32>
    %7 = arith.addf %4, %6 : vector<8x256xf32>
    %cst_5 = arith.constant 0.000000e+00 : f32
    %8 = vector.broadcast %cst_5 : f32 to vector<8x256xf32>
    %9 = arith.maximumf %7, %8 : vector<8x256xf32>
    %10 = arith.truncf %9 : vector<8x256xf32> to vector<8x256xbf16>
    %c0_6 = arith.constant 0 : index
    %c0_7 = arith.constant 0 : index
    %11 = vector.load %arg3[%c0_6, %c0_7] : memref<256x256xbf16, #tpu.memory_space<vmem>>, vector<256x256xbf16>
    %cst_8 = arith.constant dense<0.000000e+00> : vector<8x256xf32>
    %12 = tpu.matmul %10, %11, %cst_8 {dimension_numbers = #tpu.dot_dimension_numbers<[1], [0], [0], [1], [0, 0, 1, 1], [], []>} : vector<8x256xbf16>, vector<256x256xbf16>, vector<8x256xf32> -> vector<8x256xf32>
    %13 = vector.extract_strided_slice %2 {offsets = [1, 0], sizes = [1, 256], strides = [1, 1]} : vector<2x256xf32> to vector<1x256xf32>
    %14 = vector.broadcast %13 : vector<1x256xf32> to vector<8x256xf32>
    %15 = arith.addf %12, %14 : vector<8x256xf32>
    %cst_9 = arith.constant 0.000000e+00 : f32
    %16 = vector.broadcast %cst_9 : f32 to vector<8x256xf32>
    %17 = arith.maximumf %15, %16 : vector<8x256xf32>
    %c0_10 = arith.constant 0 : index
    %c0_11 = arith.constant 0 : index
    %18 = vector.load %arg6[%c0_10, %c0_11] : memref<8x128xf32, #tpu.memory_space<vmem>>, vector<8x128xf32>
    %19 = vector.extract_strided_slice %18 {offsets = [0, 0], sizes = [1, 128], strides = [1, 1]} : vector<8x128xf32> to vector<1x128xf32>
    %20 = vector.extract_strided_slice %18 {offsets = [1, 0], sizes = [1, 128], strides = [1, 1]} : vector<8x128xf32> to vector<1x128xf32>
    %21 = vector.extract_strided_slice %18 {offsets = [2, 0], sizes = [1, 128], strides = [1, 1]} : vector<8x128xf32> to vector<1x128xf32>
    %22 = vector.extract_strided_slice %18 {offsets = [3, 0], sizes = [1, 128], strides = [1, 1]} : vector<8x128xf32> to vector<1x128xf32>
    %cst_12 = arith.constant 5.000000e-01 : f32
    %23 = vector.broadcast %cst_12 : f32 to vector<1x128xf32>
    %24 = arith.cmpf ogt, %22, %23 : vector<1x128xf32>
    %25 = vector.extract_strided_slice %18 {offsets = [4, 0], sizes = [1, 128], strides = [1, 1]} : vector<8x128xf32> to vector<1x128xf32>
    %cst_13 = arith.constant 5.000000e-01 : f32
    %26 = vector.broadcast %cst_13 : f32 to vector<1x128xf32>
    %27 = arith.cmpf ogt, %25, %26 : vector<1x128xf32>
    %c0_14 = arith.constant 0 : index
    %c0_15 = arith.constant 0 : index
    %28 = vector.load %arg4[%c0_14, %c0_15] : memref<256x128xf32, #tpu.memory_space<vmem>>, vector<256x128xf32>
    %cst_16 = arith.constant dense<0.000000e+00> : vector<8x128xf32>
    %29 = tpu.matmul %17, %28, %cst_16 {dimension_numbers = #tpu.dot_dimension_numbers<[1], [0], [0], [1], [0, 0, 1, 1], [], []>} : vector<8x256xf32>, vector<256x128xf32>, vector<8x128xf32> -> vector<8x128xf32>
    %30 = vector.broadcast %19 : vector<1x128xf32> to vector<8x128xf32>
    %31 = arith.addf %29, %30 : vector<8x128xf32>
    %32 = math.absf %31 : vector<8x128xf32>
    %cst_17 = arith.constant 0.000000e+00 : f32
    %33 = vector.broadcast %cst_17 : f32 to vector<8x128xf32>
    %34 = arith.subf %33, %32 : vector<8x128xf32>
    %35 = math.exp %34 : vector<8x128xf32>
    %cst_18 = arith.constant 1.000000e+00 : f32
    %36 = vector.broadcast %cst_18 : f32 to vector<8x128xf32>
    %37 = arith.addf %36, %35 : vector<8x128xf32>
    %38 = tpu.reciprocal %37 {approx = true} : vector<8x128xf32> -> vector<8x128xf32>
    %cst_19 = arith.constant 0.000000e+00 : f32
    %39 = vector.broadcast %cst_19 : f32 to vector<8x128xf32>
    %40 = arith.cmpf oge, %31, %39 : vector<8x128xf32>
    %cst_20 = arith.constant 1.000000e+00 : f32
    %41 = vector.broadcast %cst_20 : f32 to vector<8x128xf32>
    %42 = arith.select %40, %41, %35 : vector<8x128xi1>, vector<8x128xf32>
    %43 = arith.mulf %42, %38 : vector<8x128xf32>
    %44 = vector.broadcast %21 : vector<1x128xf32> to vector<8x128xf32>
    %45 = arith.mulf %44, %43 : vector<8x128xf32>
    %46 = vector.broadcast %20 : vector<1x128xf32> to vector<8x128xf32>
    %47 = arith.addf %46, %45 : vector<8x128xf32>
    %cst_21 = arith.constant 0.000000e+00 : f32
    %48 = vector.broadcast %cst_21 : f32 to vector<8x128xf32>
    %49 = arith.maximumf %31, %48 : vector<8x128xf32>
    %50 = math.log1p %35 : vector<8x128xf32>
    %51 = arith.addf %49, %50 : vector<8x128xf32>
    %52 = vector.shape_cast %27 : vector<1x128xi1> to vector<1x128xi1>
    %53 = vector.broadcast %52 : vector<1x128xi1> to vector<8x128xi1>
    %54 = arith.select %53, %51, %31 : vector<8x128xi1>, vector<8x128xf32>
    %55 = vector.shape_cast %24 : vector<1x128xi1> to vector<1x128xi1>
    %56 = vector.broadcast %55 : vector<1x128xi1> to vector<8x128xi1>
    %57 = arith.select %56, %47, %54 : vector<8x128xi1>, vector<8x128xf32>
    %c0_22 = arith.constant 0 : index
    %c0_23 = arith.constant 0 : index
    %58 = vector.load %arg7[%c0_22, %c0_23] : memref<8x128xf32, #tpu.memory_space<vmem>>, vector<8x128xf32>
    tpu.vector_store %arg7[%c0_22, %c0_23], %57 {strides = array<i32>} : memref<8x128xf32, #tpu.memory_space<vmem>>, vector<8x128xf32>,
    return
  }
  func.func @transform_0(%arg0: i32) -> (i32, i32) {
    %c0_i32 = arith.constant 0 : i32
    %c0_i32_0 = arith.constant 0 : i32
    return %arg0, %c0_i32 : i32, i32
  }
  func.func @transform_1(%arg0: i32) -> (i32, i32) {
    %c0_i32 = arith.constant 0 : i32
    %c0_i32_0 = arith.constant 0 : i32
    %c0_i32_1 = arith.constant 0 : i32
    return %c0_i32, %c0_i32_0 : i32, i32
  }
  func.func @transform_2(%arg0: i32) -> (i32, i32) {
    %c0_i32 = arith.constant 0 : i32
    %c0_i32_0 = arith.constant 0 : i32
    %c0_i32_1 = arith.constant 0 : i32
    return %c0_i32, %c0_i32_0 : i32, i32
  }
  func.func @transform_3(%arg0: i32) -> (i32, i32) {
    %c0_i32 = arith.constant 0 : i32
    %c0_i32_0 = arith.constant 0 : i32
    %c0_i32_1 = arith.constant 0 : i32
    return %c0_i32, %c0_i32_0 : i32, i32
  }
  func.func @transform_4(%arg0: i32) -> (i32, i32) {
    %c0_i32 = arith.constant 0 : i32
    %c0_i32_0 = arith.constant 0 : i32
    %c0_i32_1 = arith.constant 0 : i32
    return %c0_i32, %c0_i32_0 : i32, i32
  }
  func.func @transform_5(%arg0: i32) -> (i32, i32) {
    %c0_i32 = arith.constant 0 : i32
    %c0_i32_0 = arith.constant 0 : i32
    %c0_i32_1 = arith.constant 0 : i32
    return %c0_i32, %c0_i32_0 : i32, i32
  }
  func.func @transform_6(%arg0: i32) -> (i32, i32) {
    %c0_i32 = arith.constant 0 : i32
    %c0_i32_0 = arith.constant 0 : i32
    return %arg0, %c0_i32 : i32, i32
  }
}

</mosaic_0001>

<llo_original>
// kernel: actor_forward.1
$region0: #{actor_forward.1}
  #allocation0 [shape = 'u32[]', space=smem, size = 0x4, offset = 0x4, fixed_abs, tag = 'smem constant byte address 0x4 - core index']
  #allocation1 [shape = 'u32[144,128]{1,0:T(1,128)}', space=vmem, size = 0x12000, scoped, tag = 'internal scratch']
  %s0 = inlined_call_operand.vmem [shape: f32[8,8], index: 0, kind: input, shape index: {}]
  %s1 = inlined_call_operand.vmem [shape: bf16[8,256], index: 1, kind: input, shape index: {}]
  %s2 = inlined_call_operand.hbm [shape: bf16[256,256], index: 2, kind: input, shape index: {}]
  %s3 = inlined_call_operand.hbm [shape: f32[256,128], index: 3, kind: input, shape index: {}]
  %s4 = inlined_call_operand.vmem [shape: f32[2,256], index: 4, kind: input, shape index: {}]
  %s5 = inlined_call_operand.vmem [shape: f32[8,128], index: 5, kind: input, shape index: {}]
  %s6 = inlined_call_operand.vmem [shape: f32[8,128], index: 6, kind: output, shape index: {}]
  %s7 = sld [smem:[#allocation0]]
  $region42: #{actor_forward.1} parent=0
    _
  %s9 = ssub.s32 1, %s7
  %s10 = scalar_select 0, %s9, %s7
  $region1: #{actor_forward.1} parent=0
    #allocation2 [shape = 'u8[131072]{0}', space=vmem, size = 0x20000, scoped, tag = 'input window, operand 2, single buffered']
    #allocation3 [shape = 's32[1]{0}', space=sflag, size = 0x4, scoped, tag = 'scoped memory for actor_forward.1']
    #allocation4 [shape = 'u8[131072]{0}', space=vmem, size = 0x20000, scoped, tag = 'input window, operand 3, single buffered']
    #allocation5 [shape = 's32[1]{0}', space=sflag, size = 0x4, scoped, tag = 'scoped memory for actor_forward.1']
    %11 = vsyncpa [#allocation3], 0
    %12 = vsyncpa [#allocation5], 0
    // Predicated region
    $region2: #{actor_forward.1} parent=1 // pred_check
      _
    $region3: #{actor_forward.1} parent=1 // pred_check_branch
      %14 = sbr.rel (0) target = $region5
    $region4: #{actor_forward.1} parent=1 // pred_region
      _
    $region5: #{actor_forward.1} parent=1 // pred_fallthru
      _
    // Predicated region
    $region6: #{actor_forward.1} parent=1 // pred_check
      _
    $region7: #{actor_forward.1} parent=1 // pred_check_branch
      %16 = sbr.rel (0) target = $region9
    $region8: #{actor_forward.1} parent=1 // pred_region
      _
    $region9: #{actor_forward.1} parent=1 // pred_fallthru
      _
    // Predicated region
    $region10: #{actor_forward.1} parent=1 // pred_check
      _
    $region11: #{actor_forward.1} parent=1 // pred_check_branch
      %18 = sbr.rel (0) target = $region13
    $region12: #{actor_forward.1} parent=1 // pred_region
      %s20 = ssub.s32 4096, 4096
      %21 = vsyncadd [#allocation3], %s20
      %s22 = sshll.u32 [#allocation2], 4
      %s23 = int_to_ptr.vmem [resolvable:$true] %s22
      %28 = dma.hbm_to_vmem [thread:$0]  %s2, 4096, %s23, [#allocation3], 128, 128, 8
    $region13: #{actor_forward.1} parent=1 // pred_fallthru
      _
    // Predicated region
    $region14: #{actor_forward.1} parent=1 // pred_check
      _
    $region15: #{actor_forward.1} parent=1 // pred_check_branch
      %30 = sbr.rel (0) target = $region17
    $region16: #{actor_forward.1} parent=1 // pred_region
      %s32 = ssub.s32 4096, 4096
      %33 = vsyncadd [#allocation5], %s32
      %s34 = sshll.u32 [#allocation4], 4
      %s35 = int_to_ptr.vmem [resolvable:$true] %s34
      %40 = dma.hbm_to_vmem [thread:$0]  %s3, 4096, %s35, [#allocation5], 128, 128, 8
    $region17: #{actor_forward.1} parent=1 // pred_fallthru
      _
    // Predicated region
    $region18: #{actor_forward.1} parent=1 // pred_check
      _
    $region19: #{actor_forward.1} parent=1 // pred_check_branch
      %42 = sbr.rel (0) target = $region21
    $region20: #{actor_forward.1} parent=1 // pred_region
      _
    $region21: #{actor_forward.1} parent=1 // pred_fallthru
      _
    // Predicated region
    $region22: #{actor_forward.1} parent=1 // pred_check
      _
    $region23: #{actor_forward.1} parent=1 // pred_check_branch
      %44 = sbr.rel (0) target = $region25
    $region24: #{actor_forward.1} parent=1 // pred_region
      _
    $region25: #{actor_forward.1} parent=1 // pred_fallthru
      _
    // Predicated region
    $region26: #{actor_forward.1} parent=1 // pred_check
      _
    $region27: #{actor_forward.1} parent=1 // pred_check_branch
      %46 = sbr.rel (0) target = $region29
    $region28: #{actor_forward.1} parent=1 // pred_region
      %47 = dma.done [#allocation3], 4096
    $region29: #{actor_forward.1} parent=1 // pred_fallthru
      _
    // Predicated region
    $region30: #{actor_forward.1} parent=1 // pred_check
      _
    $region31: #{actor_forward.1} parent=1 // pred_check_branch
      %49 = sbr.rel (0) target = $region33
    $region32: #{actor_forward.1} parent=1 // pred_region
      %50 = dma.done [#allocation5], 4096
    $region33: #{actor_forward.1} parent=1 // pred_fallthru
      _
    %v52 = vld [vmem:[%s0] sm:$0xff]
    %v53 = vpack.c.bf16 %v52, %v52
    %v54 = vld [vmem:[%s4] sm:$0xf]
    %v55 = vld [vmem:[%s1] sm:$0xff]
    %v57 = vlaneseq
    %v58 = vshrl.u32 %v57, 7
    %v59 = vsub.s32 0, %v58
    %v60 = vrot.slane %v54, %v59
    %v61 = vlaneseq
    %v62 = vshrl.u32 %v61, 7
    %v63 = vsub.s32 2, %v62
    %v64 = vrot.slane %v54, %v63
    %v67 = vlaneseq
    %v68 = vshrl.u32 %v67, 7
    %v69 = vsub.s32 0, %v68
    %v70 = vrot.slane %v60, %v69
    %v71 = vlaneseq
    %v72 = vshrl.u32 %v71, 7
    %v73 = vsub.s32 0, %v72
    %v74 = vrot.slane %v64, %v73
    %v76 = vunpack.c.l.b16 %v55
    %v77 = vunpack.c.h.b16 %v55
    %v78 = vpack.c.b16 %v76, %v76
    %v79 = vpack.c.b16 %v77, %v77
    %vm80 = vcmask 64512
    %v82 = vsel %vm80, %v53, 0
    %vm84 = vcmask 1043456
    %v86 = vsel %vm84, %v78, 0
    %v89 = vsel %vm84, %v79, 0
    %91 = vmatprep.subr.bf16.mxu0 0
    %92 = vmatpush1.bf16.msra.mxu0 0
    %93 = vmatprep.subr.bf16.mxu0 0
    %94 = vmatpush1.bf16.msra.mxu0 0
    %95 = vmatprep.subr.bf16.mxu0 0
    %96 = vmatpush1.bf16.msra.mxu0 0
    %97 = vmatprep.subr.bf16.mxu0 0
    %98 = vmatpush1.bf16.msra.mxu0 0
    %99 = vmatprep.subr.bf16.mxu0 0
    %100 = vmatpush1.bf16.msra.mxu0 0
    %101 = vmatprep.subr.bf16.mxu0 0
    %102 = vmatpush1.bf16.msra.mxu0 0
    %103 = vmatprep.subr.bf16.mxu0 0
    %104 = vmatpush1.bf16.msra.mxu0 0
    %105 = vmatprep.subr.bf16.mxu0 %v89
    %106 = vmatpush1.bf16.msra.mxu0 %v86
    %107 = vmatprep.subr.bf16.mxu0 0
    %108 = vmatpush2.bf16.msra.mxu0 0
    %109 = vmatprep.subr.bf16.mxu0 0
    %110 = vmatpush2.bf16.msra.mxu0 0
    %111 = vmatprep.subr.bf16.mxu0 0
    %112 = vmatpush2.bf16.msra.mxu0 0
    %113 = vmatprep.subr.bf16.mxu0 0
    %114 = vmatpush2.bf16.msra.mxu0 0
    %115 = vmatprep.subr.bf16.mxu0 0
    %116 = vmatpush2.bf16.msra.mxu0 0
    %117 = vmatprep.subr.bf16.mxu0 0
    %118 = vmatpush2.bf16.msra.mxu0 0
    %119 = vmatprep.subr.bf16.mxu0 0
    %120 = vmatpush2.bf16.msra.mxu0 0
    %121 = vmatprep.subr.bf16.mxu0 0
    %122 = vmatpush2.bf16.msra.mxu0 0
    %123 = vmatprep.mubr.bf16.mxu0 0
    %124 = vmatmul.mubr.bf16.gmra.mxu0 %v82
    %v125 = vpop.f32.mrf.mxu0
    %v126 = vadd.f32 %v70, %v125
    %v127 = vpop.f32.mrf.mxu0
    %v128 = vadd.f32 %v74, %v127
    %v129 = vpop.f32.mrf.mxu0
    %v130 = vpop.f32.mrf.mxu0
    %131 = vdwg.mxu0
    %v132 = vmax.f32 %v126, 0.0
    %v133 = vmax.f32 %v128, 0.0
    %v134 = vpack.c.bf16 %v132, %v132
    %v135 = vpack.c.bf16 %v133, %v133
    %v136 = vld [vmem:[#allocation2] sm:$0xff]
    %v137 = vld [vmem:[#allocation2 + $0x8] sm:$0xff]
    %v138 = vld [vmem:[#allocation2 + $0x10] sm:$0xff]
    %v139 = vld [vmem:[#allocation2 + $0x18] sm:$0xff]
    %v140 = vld [vmem:[#allocation2 + $0x20] sm:$0xff]
    %v141 = vld [vmem:[#allocation2 + $0x28] sm:$0xff]
    %v142 = vld [vmem:[#allocation2 + $0x30] sm:$0xff]
    %v143 = vld [vmem:[#allocation2 + $0x38] sm:$0xff]
    %v144 = vld [vmem:[#allocation2 + $0x40] sm:$0xff]
    %v145 = vld [vmem:[#allocation2 + $0x48] sm:$0xff]
    %v146 = vld [vmem:[#allocation2 + $0x50] sm:$0xff]
    %v147 = vld [vmem:[#allocation2 + $0x58] sm:$0xff]
    %v148 = vld [vmem:[#allocation2 + $0x60] sm:$0xff]
    %v149 = vld [vmem:[#allocation2 + $0x68] sm:$0xff]
    %v150 = vld [vmem:[#allocation2 + $0x70] sm:$0xff]
    %v151 = vld [vmem:[#allocation2 + $0x78] sm:$0xff]
    %v152 = vld [vmem:[#allocation2 + $0x80] sm:$0xff]
    %v153 = vld [vmem:[#allocation2 + $0x88] sm:$0xff]
    %v154 = vld [vmem:[#allocation2 + $0x90] sm:$0xff]
    %v155 = vld [vmem:[#allocation2 + $0x98] sm:$0xff]
    %v156 = vld [vmem:[#allocation2 + $0xa0] sm:$0xff]
    %v157 = vld [vmem:[#allocation2 + $0xa8] sm:$0xff]
    %v158 = vld [vmem:[#allocation2 + $0xb0] sm:$0xff]
    %v159 = vld [vmem:[#allocation2 + $0xb8] sm:$0xff]
    %v160 = vld [vmem:[#allocation2 + $0xc0] sm:$0xff]
    %v161 = vld [vmem:[#allocation2 + $0xc8] sm:$0xff]
    %v162 = vld [vmem:[#allocation2 + $0xd0] sm:$0xff]
    %v163 = vld [vmem:[#allocation2 + $0xd8] sm:$0xff]
    %v164 = vld [vmem:[#allocation2 + $0xe0] sm:$0xff]
    %v165 = vld [vmem:[#allocation2 + $0xe8] sm:$0xff]
    %v166 = vld [vmem:[#allocation2 + $0xf0] sm:$0xff]
    %v167 = vld [vmem:[#allocation2 + $0xf8] sm:$0xff]
    %v168 = vlaneseq
    %v169 = vshrl.u32 %v168, 7
    %v170 = vsub.s32 1, %v169
    %v171 = vrot.slane %v54, %v170
    %v172 = vlaneseq
    %v173 = vshrl.u32 %v172, 7
    %v174 = vsub.s32 3, %v173
    %v175 = vrot.slane %v54, %v174
    %v178 = vlaneseq
    %v179 = vshrl.u32 %v178, 7
    %v180 = vsub.s32 1, %v179
    %v181 = vrot.slane %v171, %v180
    %v182 = vlaneseq
    %v183 = vshrl.u32 %v182, 7
    %v184 = vsub.s32 1, %v183
    %v185 = vrot.slane %v175, %v184
    %v218 = vunpack.c.l.b16 %v136
    %v219 = vunpack.c.h.b16 %v136
    %v220 = vunpack.c.l.b16 %v137
    %v221 = vunpack.c.h.b16 %v137
    %v222 = vunpack.c.l.b16 %v138
    %v223 = vunpack.c.h.b16 %v138
    %v224 = vunpack.c.l.b16 %v139
    %v225 = vunpack.c.h.b16 %v139
    %v226 = vunpack.c.l.b16 %v140
    %v227 = vunpack.c.h.b16 %v140
    %v228 = vunpack.c.l.b16 %v141
    %v229 = vunpack.c.h.b16 %v141
    %v230 = vunpack.c.l.b16 %v142
    %v231 = vunpack.c.h.b16 %v142
    %v232 = vunpack.c.l.b16 %v143
    %v233 = vunpack.c.h.b16 %v143
    %v234 = vunpack.c.l.b16 %v144
    %v235 = vunpack.c.h.b16 %v144
    %v236 = vunpack.c.l.b16 %v145
    %v237 = vunpack.c.h.b16 %v145
    %v238 = vunpack.c.l.b16 %v146
    %v239 = vunpack.c.h.b16 %v146
    %v240 = vunpack.c.l.b16 %v147
    %v241 = vunpack.c.h.b16 %v147
    %v242 = vunpack.c.l.b16 %v148
    %v243 = vunpack.c.h.b16 %v148
    %v244 = vunpack.c.l.b16 %v149
    %v245 = vunpack.c.h.b16 %v149
    %v246 = vunpack.c.l.b16 %v150
    %v247 = vunpack.c.h.b16 %v150
    %v248 = vunpack.c.l.b16 %v151
    %v249 = vunpack.c.h.b16 %v151
    %v250 = vunpack.c.l.b16 %v152
    %v251 = vunpack.c.h.b16 %v152
    %v252 = vunpack.c.l.b16 %v153
    %v253 = vunpack.c.h.b16 %v153
    %v254 = vunpack.c.l.b16 %v154
    %v255 = vunpack.c.h.b16 %v154
    %v256 = vunpack.c.l.b16 %v155
    %v257 = vunpack.c.h.b16 %v155
    %v258 = vunpack.c.l.b16 %v156
    %v259 = vunpack.c.h.b16 %v156
    %v260 = vunpack.c.l.b16 %v157
    %v261 = vunpack.c.h.b16 %v157
    %v262 = vunpack.c.l.b16 %v158
    %v263 = vunpack.c.h.b16 %v158
    %v264 = vunpack.c.l.b16 %v159
    %v265 = vunpack.c.h.b16 %v159
    %v266 = vunpack.c.l.b16 %v160
    %v267 = vunpack.c.h.b16 %v160
    %v268 = vunpack.c.l.b16 %v161
    %v269 = vunpack.c.h.b16 %v161
    %v270 = vunpack.c.l.b16 %v162
    %v271 = vunpack.c.h.b16 %v162
    %v272 = vunpack.c.l.b16 %v163
    %v273 = vunpack.c.h.b16 %v163
    %v274 = vunpack.c.l.b16 %v164
    %v275 = vunpack.c.h.b16 %v164
    %v276 = vunpack.c.l.b16 %v165
    %v277 = vunpack.c.h.b16 %v165
    %v278 = vunpack.c.l.b16 %v166
    %v279 = vunpack.c.h.b16 %v166
    %v280 = vunpack.c.l.b16 %v167
    %v281 = vunpack.c.h.b16 %v167
    %v282 = vpack.c.b16 %v220, %v218
    %v283 = vpack.c.b16 %v221, %v219
    %v284 = vpack.c.b16 %v224, %v222
    %v285 = vpack.c.b16 %v225, %v223
    %v286 = vpack.c.b16 %v228, %v226
    %v287 = vpack.c.b16 %v229, %v227
    %v288 = vpack.c.b16 %v232, %v230
    %v289 = vpack.c.b16 %v233, %v231
    %v290 = vpack.c.b16 %v236, %v234
    %v291 = vpack.c.b16 %v237, %v235
    %v292 = vpack.c.b16 %v240, %v238
    %v293 = vpack.c.b16 %v241, %v239
    %v294 = vpack.c.b16 %v244, %v242
    %v295 = vpack.c.b16 %v245, %v243
    %v296 = vpack.c.b16 %v248, %v246
    %v297 = vpack.c.b16 %v249, %v247
    %v298 = vpack.c.b16 %v252, %v250
    %v299 = vpack.c.b16 %v253, %v251
    %v300 = vpack.c.b16 %v256, %v254
    %v301 = vpack.c.b16 %v257, %v255
    %v302 = vpack.c.b16 %v260, %v258
    %v303 = vpack.c.b16 %v261, %v259
    %v304 = vpack.c.b16 %v264, %v262
    %v305 = vpack.c.b16 %v265, %v263
    %v306 = vpack.c.b16 %v268, %v266
    %v307 = vpack.c.b16 %v269, %v267
    %v308 = vpack.c.b16 %v272, %v270
    %v309 = vpack.c.b16 %v273, %v271
    %v310 = vpack.c.b16 %v276, %v274
    %v311 = vpack.c.b16 %v277, %v275
    %v312 = vpack.c.b16 %v280, %v278
    %v313 = vpack.c.b16 %v281, %v279
    %346 = vmatprep.subr.bf16.mxu0 %v297
    %347 = vmatpush1.bf16.msra.mxu0 %v296
    %348 = vmatprep.subr.bf16.mxu0 %v295
    %349 = vmatpush1.bf16.msra.mxu0 %v294
    %350 = vmatprep.subr.bf16.mxu0 %v293
    %351 = vmatpush1.bf16.msra.mxu0 %v292
    %352 = vmatprep.subr.bf16.mxu0 %v291
    %353 = vmatpush1.bf16.msra.mxu0 %v290
    %354 = vmatprep.subr.bf16.mxu0 %v289
    %355 = vmatpush1.bf16.msra.mxu0 %v288
    %356 = vmatprep.subr.bf16.mxu0 %v287
    %357 = vmatpush1.bf16.msra.mxu0 %v286
    %358 = vmatprep.subr.bf16.mxu0 %v285
    %359 = vmatpush1.bf16.msra.mxu0 %v284
    %360 = vmatprep.subr.bf16.mxu0 %v283
    %361 = vmatpush1.bf16.msra.mxu0 %v282
    %362 = vmatprep.subr.bf16.mxu0 %v313
    %363 = vmatpush2.bf16.msra.mxu0 %v312
    %364 = vmatprep.subr.bf16.mxu0 %v311
    %365 = vmatpush2.bf16.msra.mxu0 %v310
    %366 = vmatprep.subr.bf16.mxu0 %v309
    %367 = vmatpush2.bf16.msra.mxu0 %v308
    %368 = vmatprep.subr.bf16.mxu0 %v307
    %369 = vmatpush2.bf16.msra.mxu0 %v306
    %370 = vmatprep.subr.bf16.mxu0 %v305
    %371 = vmatpush2.bf16.msra.mxu0 %v304
    %372 = vmatprep.subr.bf16.mxu0 %v303
    %373 = vmatpush2.bf16.msra.mxu0 %v302
    %374 = vmatprep.subr.bf16.mxu0 %v301
    %375 = vmatpush2.bf16.msra.mxu0 %v300
    %376 = vmatprep.subr.bf16.mxu0 %v299
    %377 = vmatpush2.bf16.msra.mxu0 %v298
    %378 = vmatprep.mubr.bf16.mxu0 %v135
    %379 = vmatmul.mubr.bf16.gmra.mxu0 %v134
    %v380 = vpop.f32.mrf.mxu0
    %v381 = vadd.f32 %v181, %v380
    %v382 = vpop.f32.mrf.mxu0
    %v383 = vadd.f32 %v185, %v382
    %v384 = vpop.f32.mrf.mxu0
    %v385 = vpop.f32.mrf.mxu0
    %386 = vdwg.mxu0
    %v387 = vmax.f32 %v381, 0.0
    %v388 = vmax.f32 %v383, 0.0
    %v389 = vld [vmem:[%s5] sm:$0xff]
    %vm390 = vcmp.gt.f32.partialorder %v389, 0.5
    %v391 = vld [vmem:[#allocation4] sm:$0xff]
    %v392 = vld [vmem:[#allocation4 + $0x8] sm:$0xff]
    %v393 = vld [vmem:[#allocation4 + $0x10] sm:$0xff]
    %v394 = vld [vmem:[#allocation4 + $0x18] sm:$0xff]
    %v395 = vld [vmem:[#allocation4 + $0x20] sm:$0xff]
    %v396 = vld [vmem:[#allocation4 + $0x28] sm:$0xff]
    %v397 = vld [vmem:[#allocation4 + $0x30] sm:$0xff]
    %v398 = vld [vmem:[#allocation4 + $0x38] sm:$0xff]
    %v399 = vld [vmem:[#allocation4 + $0x40] sm:$0xff]
    %v400 = vld [vmem:[#allocation4 + $0x48] sm:$0xff]
    %v401 = vld [vmem:[#allocation4 + $0x50] sm:$0xff]
    %v402 = vld [vmem:[#allocation4 + $0x58] sm:$0xff]
    %v403 = vld [vmem:[#allocation4 + $0x60] sm:$0xff]
    %v404 = vld [vmem:[#allocation4 + $0x68] sm:$0xff]
    %v405 = vld [vmem:[#allocation4 + $0x70] sm:$0xff]
    %v406 = vld [vmem:[#allocation4 + $0x78] sm:$0xff]
    %v407 = vld [vmem:[#allocation4 + $0x80] sm:$0xff]
    %v408 = vld [vmem:[#allocation4 + $0x88] sm:$0xff]
    %v409 = vld [vmem:[#allocation4 + $0x90] sm:$0xff]
    %v410 = vld [vmem:[#allocation4 + $0x98] sm:$0xff]
    %v411 = vld [vmem:[#allocation4 + $0xa0] sm:$0xff]
    %v412 = vld [vmem:[#allocation4 + $0xa8] sm:$0xff]
    %v413 = vld [vmem:[#allocation4 + $0xb0] sm:$0xff]
    %v414 = vld [vmem:[#allocation4 + $0xb8] sm:$0xff]
    %v415 = vld [vmem:[#allocation4 + $0xc0] sm:$0xff]
    %v416 = vld [vmem:[#allocation4 + $0xc8] sm:$0xff]
    %v417 = vld [vmem:[#allocation4 + $0xd0] sm:$0xff]
    %v418 = vld [vmem:[#allocation4 + $0xd8] sm:$0xff]
    %v419 = vld [vmem:[#allocation4 + $0xe0] sm:$0xff]
    %v420 = vld [vmem:[#allocation4 + $0xe8] sm:$0xff]
    %v421 = vld [vmem:[#allocation4 + $0xf0] sm:$0xff]
    %v422 = vld [vmem:[#allocation4 + $0xf8] sm:$0xff]
    %v423 = vlaneseq
    %v424 = vshrl.u32 %v423, 7
    %v425 = vsub.s32 0, %v424
    %v426 = vrot.slane %v389, %v425
    %427 = vmatprep.subr.mxu0 0.0
    %428 = vmatpush1.msra.mxu0 %v406
    %429 = vmatprep.subr.mxu0 0.0
    %430 = vmatpush1.msra.mxu0 %v405
    %431 = vmatprep.subr.mxu0 0.0
    %432 = vmatpush1.msra.mxu0 %v404
    %433 = vmatprep.subr.mxu0 0.0
    %434 = vmatpush1.msra.mxu0 %v403
    %435 = vmatprep.subr.mxu0 0.0
    %436 = vmatpush1.msra.mxu0 %v402
    %437 = vmatprep.subr.mxu0 0.0
    %438 = vmatpush1.msra.mxu0 %v401
    %439 = vmatprep.subr.mxu0 0.0
    %440 = vmatpush1.msra.mxu0 %v400
    %441 = vmatprep.subr.mxu0 0.0
    %442 = vmatpush1.msra.mxu0 %v399
    %443 = vmatprep.subr.mxu0 0.0
    %444 = vmatpush1.msra.mxu0 %v398
    %445 = vmatprep.subr.mxu0 0.0
    %446 = vmatpush1.msra.mxu0 %v397
    %447 = vmatprep.subr.mxu0 0.0
    %448 = vmatpush1.msra.mxu0 %v396
    %449 = vmatprep.subr.mxu0 0.0
    %450 = vmatpush1.msra.mxu0 %v395
    %451 = vmatprep.subr.mxu0 0.0
    %452 = vmatpush1.msra.mxu0 %v394
    %453 = vmatprep.subr.mxu0 0.0
    %454 = vmatpush1.msra.mxu0 %v393
    %455 = vmatprep.subr.mxu0 0.0
    %456 = vmatpush1.msra.mxu0 %v392
    %457 = vmatprep.subr.mxu0 0.0
    %458 = vmatpush1.msra.mxu0 %v391
    %459 = vmatprep.subr.mxu0 0.0
    %460 = vmatpush2.msra.mxu0 %v422
    %461 = vmatprep.subr.mxu0 0.0
    %462 = vmatpush2.msra.mxu0 %v421
    %463 = vmatprep.subr.mxu0 0.0
    %464 = vmatpush2.msra.mxu0 %v420
    %465 = vmatprep.subr.mxu0 0.0
    %466 = vmatpush2.msra.mxu0 %v419
    %467 = vmatprep.subr.mxu0 0.0
    %468 = vmatpush2.msra.mxu0 %v418
    %469 = vmatprep.subr.mxu0 0.0
    %470 = vmatpush2.msra.mxu0 %v417
    %471 = vmatprep.subr.mxu0 0.0
    %472 = vmatpush2.msra.mxu0 %v416
    %473 = vmatprep.subr.mxu0 0.0
    %474 = vmatpush2.msra.mxu0 %v415
    %475 = vmatprep.subr.mxu0 0.0
    %476 = vmatpush2.msra.mxu0 %v414
    %477 = vmatprep.subr.mxu0 0.0
    %478 = vmatpush2.msra.mxu0 %v413
    %479 = vmatprep.subr.mxu0 0.0
    %480 = vmatpush2.msra.mxu0 %v412
    %481 = vmatprep.subr.mxu0 0.0
    %482 = vmatpush2.msra.mxu0 %v411
    %483 = vmatprep.subr.mxu0 0.0
    %484 = vmatpush2.msra.mxu0 %v410
    %485 = vmatprep.subr.mxu0 0.0
    %486 = vmatpush2.msra.mxu0 %v409
    %487 = vmatprep.subr.mxu0 0.0
    %488 = vmatpush2.msra.mxu0 %v408
    %489 = vmatprep.subr.mxu0 0.0
    %490 = vmatpush2.msra.mxu0 %v407
    %491 = vmatprep.mubr.f32.mxu0 %v388
    %492 = vmatmul.mubr.f32.gmra.mxu0 %v387
    %v493 = vpop.f32.mrf.mxu0
    %v494 = vadd.f32 %v426, %v493
    %v495 = vpop.f32.mrf.mxu0
    %496 = vdwg.mxu0
    %v497 = vand.u32 2147483647, %v494
    %v498 = vsub.f32 0.0, %v497
    %v499 = vmul.f32 %v498, 1.442695
    %v500 = vpow.pop %v499
    %v501 = vadd.f32 %v500, 1.0
    %v502 = vrcp.pop %v501
    %vm503 = vcmp.ge.f32.partialorder %v494, 0.0
    %v504 = vsel %vm503, 1.0, %v500
    %v505 = vmul.f32 %v504, %v502
    %v506 = vlaneseq
    %v507 = vshrl.u32 %v506, 7
    %v508 = vsub.s32 2, %v507
    %v509 = vrot.slane %v389, %v508
    %v510 = vmul.f32 %v509, %v505
    %v511 = vlaneseq
    %v512 = vshrl.u32 %v511, 7
    %v513 = vsub.s32 1, %v512
    %v514 = vrot.slane %v389, %v513
    %v515 = vadd.f32 %v514, %v510
    %v516 = vmax.f32 %v494, 0.0
    %v517 = vadd.f32 %v500, 1.0
    %v518 = vlog2.pop %v517
    %v519 = vmul.f32 %v518, 0.6931472
    %v520 = vmul.f32 -0.5, %v500
    %v521 = vadd.f32 %v520, 1.0
    %v522 = vmul.f32 %v521, %v500
    %v523 = vand.u32 2147483647, %v500
    %vm524 = vcmp.lt.f32.partialorder %v523, 0.0004427343
    %v525 = vsel %vm524, %v522, %v519
    %v526 = vadd.f32 %v516, %v525
    %v527 = vsel %vm390, 1, 0
    %v528 = vlaneseq
    %v529 = vshrl.u32 %v528, 7
    %v530 = vsub.s32 4, %v529
    %v531 = vrot.slane %v527, %v530
    %vm532 = vcmp.eq.s32.totalorder %v531, 1
    %v533 = vsel %vm532, %v526, %v494
    %v534 = vlaneseq
    %v535 = vshrl.u32 %v534, 7
    %v536 = vsub.s32 3, %v535
    %v537 = vrot.slane %v527, %v536
    %vm538 = vcmp.eq.s32.totalorder %v537, 1
    %v539 = vsel %vm538, %v515, %v533
    %540 = vst [vmem:[%s6] sm:$0xff] %v539
    // Predicated region
    $region34: #{actor_forward.1} parent=1 // pred_check
      _
    $region35: #{actor_forward.1} parent=1 // pred_check_branch
      %542 = sbr.rel (0) target = $region37
    $region36: #{actor_forward.1} parent=1 // pred_region
      _
    $region37: #{actor_forward.1} parent=1 // pred_fallthru
      _
    // Predicated region
    $region38: #{actor_forward.1} parent=1 // pred_check
      _
    $region39: #{actor_forward.1} parent=1 // pred_check_branch
      %544 = sbr.rel (0) target = $region41
    $region40: #{actor_forward.1} parent=1 // pred_region
      _
    $region41: #{actor_forward.1} parent=1 // pred_fallthru
      _
    %545 = vsyncpa [#allocation3], 1
    %546 = vsyncpa [#allocation5], 1

</llo_original>
